<compile_context>
chip_gen: v5e
topology: v5e:2x2
jax: 0.10.0
libtpu: 0.0.40
codegen_flags: <defaults>
</compile_context>

<pallas_src>
import functools
import math

import jax
import jax.numpy as jnp
import numpy as np
from jax.experimental import pallas as pl
from jax.experimental.pallas import tpu as pltpu


# ----------------------------------------------------------------------------- kernel


def _fused_resblock_kernel(*refs, n_layers, kwidth, dilations, tl, halo, lout0, mm_dtype):
    """Fused Conv1DResBlock forward for one (batch, length-tile) grid step.

    refs layout: [x_win, w_0..w_{n-1}, b_0..b_{n-1}, a_0..a_{n-1}, out]
      x_win : (kwidth*Cin0, tl + 2*halo)  bf16   layer-0 im2col window (stride folded)
      w_0   : (C0, kwidth*Cin0)           bf16   folded layer-0 weight
      w_l   : (kwidth, C_l, C_{l-1})      bf16   tap-major weights, dilated layers
      b_l   : (C_l, 1) f32, a_l : (C_l, 1) f32   bias / PReLU slope
      out   : (C_{n-1}, tl)               f32
    """
    x_ref = refs[0]
    w_refs = refs[1:1 + n_layers]
    b_refs = refs[1 + n_layers:1 + 2 * n_layers]
    a_refs = refs[1 + 2 * n_layers:1 + 3 * n_layers]
    o_ref = refs[1 + 3 * n_layers]

    j = pl.program_id(1)                                    # length-tile index

    def prelu(x, a):                                        # a: (C,1) broadcast over lanes
        return jnp.where(x >= 0.0, x, x * a)

    def mask_valid(h, left_ext):
        # Zero columns whose global index lies outside [0, lout0). These are exactly the
        # zeros that F.pad(h, (p, p)) would have inserted before the next dilated conv.
        w = h.shape[1]
        col = jax.lax.broadcasted_iota(jnp.int32, (1, w), 1) + (j * tl - left_ext)
        valid = jnp.logical_and(col >= 0, col < lout0)
        return jnp.where(valid, h, jnp.zeros_like(h))

    # ---- layer 0: stride + taps already folded into channels -> single MXU dot.
    x = x_ref[...]                                          # (K*Cin0, tl+2*halo) bf16
    acc = jnp.dot(w_refs[0][...], x, preferred_element_type=jnp.float32)
    h = prelu(acc + b_refs[0][...], a_refs[0][...])         # (C0, tl+2*halo) f32
    h = mask_valid(h, halo)
    res = h[:, halo:halo + tl]                              # residual activation (C0, tl)

    # ---- dilated layers 1..n-1 on VMEM-resident values (no HBM traffic).
    left = halo
    for li in range(1, n_layers):
        d = dilations[li]
        shrink = (kwidth - 1) * d // 2                      # per-side domain shrink
        w_in = h.shape[1]
        w_out = w_in - 2 * shrink
        cout = w_refs[li].shape[1]
        acc = jnp.zeros((cout, w_out), jnp.float32)
        for k in range(kwidth):                             # kwidth is tiny & static
            xk = h[:, k * d:k * d + w_out].astype(mm_dtype)
            acc = acc + jnp.dot(w_refs[li][k], xk, preferred_element_type=jnp.float32)
        h = prelu(acc + b_refs[li][...], a_refs[li][...])
        left -= shrink
        if li < n_layers - 1:
            h = mask_valid(h, left)                         # emulate F.pad zeros for next conv

    o_ref[...] = (h + res).astype(o_ref.dtype)              # fused residual add


# ----------------------------------------------------------------------------- wrapper


def _const_index_map(ndim):
    zeros = (0,) * ndim
    return lambda b, j: zeros


def conv1d_res_block_forward(x_ncw, layers, *, kwidth=3, dilations=(1, 2, 4, 8),
                             stride=4, length_tile=512, mm_dtype=jnp.bfloat16):
    """Forward pass matching Conv1DResBlock.forward. Input/output are NCW (B, C, L)."""
    # TODO(synk): transpose=True (ConvTranspose1d first layer) not implemented; this matches
    # the module default transpose=False.
    assert kwidth % 2 == 1, "residual add requires odd kwidth (length-preserving dilated convs)"
    B, cin, L = x_ncw.shape
    n_layers = len(layers)
    d0 = dilations[0]

    # ---- layer-0 padding rule (identical to the PyTorch forward).
    if stride > 1:
        pad_l, pad_r = kwidth // 2 - 1, kwidth // 2
    else:
        p = (kwidth - 1) * d0 // 2
        pad_l = pad_r = p
    xpad = jnp.pad(x_ncw, ((0, 0), (0, 0), (pad_l, pad_r)))
    lpad = L + pad_l + pad_r
    lout0 = (lpad - d0 * (kwidth - 1) - 1) // stride + 1

    # ---- fold stride + taps of layer 0 into channels (im2col in the wrapper):
    #      x0col[b, k*Cin+ci, t] = xpad[b, ci, stride*t + k*d0]
    taps = []
    for k in range(kwidth):
        start = k * d0
        limit = start + stride * (lout0 - 1) + 1
        taps.append(jax.lax.slice(xpad, (0, 0, start), (B, cin, limit), (1, 1, stride)))
    x0col = jnp.concatenate(taps, axis=1)                   # (B, K*Cin, lout0)

    # ---- length tiling with halo; padded exactly once (no per-layer HBM pads).
    halo = sum((kwidth - 1) * d // 2 for d in dilations[1:])
    if lout0 <= length_tile:
        tl, nt = lout0, 1                                   # single tile: block = full dim
    else:
        tl = length_tile                                    # multiple of 128 -> lane-dense stores
        nt = -(-lout0 // tl)
    lceil = nt * tl
    wext = tl + 2 * halo
    x0p = jnp.pad(x0col, ((0, 0), (0, 0), (halo, halo + lceil - lout0)))
    wins = jnp.stack([jax.lax.slice_in_dim(x0p, j * tl, j * tl + wext, axis=2)
                      for j in range(nt)], axis=1)          # (B, nt, K*Cin, wext)
    wins = wins.astype(mm_dtype)

    # ---- parameters: bf16 matmul operands, f32 bias / PReLU slopes.
    w0 = layers[0]['w']                                     # (C0, Cin, K)
    c0 = w0.shape[0]
    w_args = [jnp.transpose(w0, (0, 2, 1)).reshape(c0, kwidth * cin).astype(mm_dtype)]
    for layer in layers[1:]:
        w = layer['w']                                      # (Cout, Cin_l, K)
        w_args.append(jnp.transpose(w, (2, 0, 1)).astype(mm_dtype))   # (K, Cout, Cin_l)
    b_args = [l['b'].reshape(-1, 1).astype(jnp.float32) for l in layers]
    a_args = [l['alpha'].reshape(-1, 1).astype(jnp.float32) for l in layers]
    cout_last = layers[-1]['w'].shape[0]

    # ---- BlockSpecs: windows tiled over (batch, length-tile); params are full, resident.
    in_specs = [pl.BlockSpec((pl.Squeezed(), pl.Squeezed(), kwidth * cin, wext),
                             lambda b, j: (b, j, 0, 0))]
    for arr in w_args + b_args + a_args:
        in_specs.append(pl.BlockSpec(arr.shape, _const_index_map(arr.ndim)))
    out_spec = pl.BlockSpec((pl.Squeezed(), cout_last, tl), lambda b, j: (b, 0, j))

    kernel = functools.partial(
        _fused_resblock_kernel, n_layers=n_layers, kwidth=kwidth,
        dilations=tuple(dilations), tl=tl, halo=halo, lout0=lout0, mm_dtype=mm_dtype)

    out = pl.pallas_call(
        kernel,
        out_shape=jax.ShapeDtypeStruct((B, cout_last, lceil), jnp.float32),
        grid=(B, nt),
        in_specs=in_specs,
        out_specs=out_spec,
        compiler_params=pltpu.CompilerParams(
            dimension_semantics=("parallel", "parallel"),
            vmem_limit_bytes=48 * 1024 * 1024),             # fits v7x's 64 MiB with headroom
    )(wins, *w_args, *b_args, *a_args)

    return out[:, :, :lout0]                                # drop tile padding; already NCW


# ----------------------------------------------------------------------------- params / reference


def init_conv1d_res_block_params(key, ninputs, fmaps, kwidth=3,
                                 dilations=(1, 2, 4, 8), stride=4):
    """Mirrors Conv1DResBlock.__init__ (transpose=False, bias=True, act='prelu')."""
    assert dilations[0] == 1 and len(dilations) > 1
    layers = []
    prev_in = ninputs
    for n, d in enumerate(dilations):
        curr_stride = stride if n == 0 else 1
        if n == 0 or n + 1 >= len(dilations):
            curr_fmaps = fmaps
        else:
            curr_fmaps = max(fmaps // 4, 1)
        key, kw, kb = jax.random.split(key, 3)
        bound = 1.0 / math.sqrt(prev_in * kwidth)            # PyTorch conv default init
        w = jax.random.uniform(kw, (curr_fmaps, prev_in, kwidth),
                               jnp.float32, -bound, bound)   # (Cout, Cin, K)
        b = jax.random.uniform(kb, (curr_fmaps,), jnp.float32, -bound, bound)
        alpha = jnp.full((curr_fmaps,), 0.25, jnp.float32)   # PReLU default init
        layers.append(dict(w=w, b=b, alpha=alpha, stride=curr_stride, dilation=d))
        prev_in = curr_fmaps
    return layers


def _reference_forward(x_ncw, layers, *, kwidth, dilations, stride):
    """Pure-JAX replica of the PyTorch forward for correctness checking."""
    h = x_ncw
    res_act = None
    for li, layer in enumerate(layers):
        if stride > 1 and li == 0:
            pad = (kwidth // 2 - 1, kwidth // 2)
        else:
            p = (kwidth - 1) * dilations[li] // 2
            pad = (p, p)
        h = jnp.pad(h, ((0, 0), (0, 0), pad))
        h = jax.lax.conv_general_dilated(
            h, layer['w'], window_strides=(layer['stride'],), padding='VALID',
            rhs_dilation=(layer['dilation'],),
            dimension_numbers=('NCH', 'OIH', 'NCH'),
            precision=jax.lax.Precision.HIGHEST)
        h = h + layer['b'][None, :, None]
        a = layer['alpha'][None, :, None]
        h = jnp.where(h >= 0.0, h, h * a)
        if li == 0:
            res_act = h
    return h + res_act


if __name__ == "__main__":
    B, NINPUTS, L = 2, 4, 32
    FMAPS, KWIDTH, DILATIONS, STRIDE = 8, 3, (1, 2, 4, 8), 4

    key = jax.random.PRNGKey(0)
    kx, kp = jax.random.split(key)
    x = jax.random.normal(kx, (B, NINPUTS, L), jnp.float32)   # PyTorch NCW
    layers = init_conv1d_res_block_params(kp, NINPUTS, FMAPS, KWIDTH,
                                          DILATIONS, STRIDE)

    out = conv1d_res_block_forward(x, layers, kwidth=KWIDTH,
                                   dilations=DILATIONS, stride=STRIDE)
    out = jax.block_until_ready(out)

    ref = _reference_forward(x, layers, kwidth=KWIDTH,
                             dilations=DILATIONS, stride=STRIDE)
    assert out.shape == ref.shape, (out.shape, ref.shape)
    # Matmul operands are bf16 (f32 accumulation / epilogue) -> compare at bf16-level tolerance.
    np.testing.assert_allclose(np.asarray(out), np.asarray(ref), rtol=2e-2, atol=2e-2)
    print("KERNEL_OK")
</pallas_src>

<mosaic_0001>
module attributes {stable_mosaic.version = 11 : i64} {
  func.func @_fused_resblock_kernel(%arg0: i32, %arg1: i32, %arg2: memref<1x1x12x36xbf16, #tpu.memory_space<vmem>>, %arg3: memref<8x12xbf16, #tpu.memory_space<vmem>>, %arg4: memref<3x2x8xbf16, #tpu.memory_space<vmem>>, %arg5: memref<3x2x2xbf16, #tpu.memory_space<vmem>>, %arg6: memref<3x8x2xbf16, #tpu.memory_space<vmem>>, %arg7: memref<8x1xf32, #tpu.memory_space<vmem>>, %arg8: memref<2x1xf32, #tpu.memory_space<vmem>>, %arg9: memref<2x1xf32, #tpu.memory_space<vmem>>, %arg10: memref<8x1xf32, #tpu.memory_space<vmem>>, %arg11: memref<8x1xf32, #tpu.memory_space<vmem>>, %arg12: memref<2x1xf32, #tpu.memory_space<vmem>>, %arg13: memref<2x1xf32, #tpu.memory_space<vmem>>, %arg14: memref<8x1xf32, #tpu.memory_space<vmem>>, %arg15: memref<1x8x8xf32, #tpu.memory_space<vmem>>) attributes {dimension_semantics = [#tpu.dimension_semantics<parallel>, #tpu.dimension_semantics<parallel>], iteration_bounds = array<i64: 2, 1>, scalar_prefetch = 0 : i64, scratch_operands = 0 : i64, tpu.core_type = #tpu.core_type<tc>, window_params = [{transform_indices = @transform_0, window_bounds = array<i64: 1, 1, 12, 36>}, {pipeline_mode = #tpu.pipeline_mode<synchronous>, transform_indices = @transform_1, window_bounds = array<i64: 8, 12>}, {pipeline_mode = #tpu.pipeline_mode<synchronous>, transform_indices = @transform_2, window_bounds = array<i64: 3, 2, 8>}, {pipeline_mode = #tpu.pipeline_mode<synchronous>, transform_indices = @transform_3, window_bounds = array<i64: 3, 2, 2>}, {pipeline_mode = #tpu.pipeline_mode<synchronous>, transform_indices = @transform_4, window_bounds = array<i64: 3, 8, 2>}, {pipeline_mode = #tpu.pipeline_mode<synchronous>, transform_indices = @transform_5, window_bounds = array<i64: 8, 1>}, {pipeline_mode = #tpu.pipeline_mode<synchronous>, transform_indices = @transform_6, window_bounds = array<i64: 2, 1>}, {pipeline_mode = #tpu.pipeline_mode<synchronous>, transform_indices = @transform_7, window_bounds = array<i64: 2, 1>}, {pipeline_mode = #tpu.pipeline_mode<synchronous>, transform_indices = @transform_8, window_bounds = array<i64: 8, 1>}, {pipeline_mode = #tpu.pipeline_mode<synchronous>, transform_indices = @transform_9, window_bounds = array<i64: 8, 1>}, {pipeline_mode = #tpu.pipeline_mode<synchronous>, transform_indices = @transform_10, window_bounds = array<i64: 2, 1>}, {pipeline_mode = #tpu.pipeline_mode<synchronous>, transform_indices = @transform_11, window_bounds = array<i64: 2, 1>}, {pipeline_mode = #tpu.pipeline_mode<synchronous>, transform_indices = @transform_12, window_bounds = array<i64: 8, 1>}, {transform_indices = @transform_13, window_bounds = array<i64: 1, 8, 8>}]} {
    %c0 = arith.constant 0 : index
    %c0_0 = arith.constant 0 : index
    %c0_1 = arith.constant 0 : index
    %c0_2 = arith.constant 0 : index
    %0 = vector.load %arg2[%c0, %c0_0, %c0_1, %c0_2] : memref<1x1x12x36xbf16, #tpu.memory_space<vmem>>, vector<1x1x12x36xbf16>
    %1 = vector.shape_cast %0 : vector<1x1x12x36xbf16> to vector<12x36xbf16>
    %c0_3 = arith.constant 0 : index
    %c0_4 = arith.constant 0 : index
    %2 = vector.load %arg3[%c0_3, %c0_4] : memref<8x12xbf16, #tpu.memory_space<vmem>>, vector<8x12xbf16>
    %cst = arith.constant dense<0.000000e+00> : vector<8x36xf32>
    %3 = tpu.matmul %2, %1, %cst {dimension_numbers = #tpu.dot_dimension_numbers<[1], [0], [0], [1], [0, 0, 1, 1], [], []>} : vector<8x12xbf16>, vector<12x36xbf16>, vector<8x36xf32> -> vector<8x36xf32>
    %c0_5 = arith.constant 0 : index
    %c0_6 = arith.constant 0 : index
    %4 = vector.load %arg7[%c0_5, %c0_6] : memref<8x1xf32, #tpu.memory_space<vmem>>, vector<8x1xf32>
    %5 = vector.broadcast %4 : vector<8x1xf32> to vector<8x36xf32>
    %6 = arith.addf %3, %5 : vector<8x36xf32>
    %c0_7 = arith.constant 0 : index
    %c0_8 = arith.constant 0 : index
    %7 = vector.load %arg11[%c0_7, %c0_8] : memref<8x1xf32, #tpu.memory_space<vmem>>, vector<8x1xf32>
    %cst_9 = arith.constant 0.000000e+00 : f32
    %8 = vector.broadcast %cst_9 : f32 to vector<8x36xf32>
    %9 = arith.cmpf oge, %6, %8 : vector<8x36xf32>
    %10 = vector.broadcast %7 : vector<8x1xf32> to vector<8x36xf32>
    %11 = arith.mulf %6, %10 : vector<8x36xf32>
    %12 = arith.select %9, %6, %11 : vector<8x36xi1>, vector<8x36xf32>
    %13 = tpu.iota {dimensions = array<i32: 1>} : vector<1x36xi32>
    %c8_i32 = arith.constant 8 : i32
    %14 = arith.muli %arg1, %c8_i32 : i32
    %c14_i32 = arith.constant 14 : i32
    %15 = arith.subi %14, %c14_i32 : i32
    %16 = vector.broadcast %15 : i32 to vector<1x36xi32>
    %17 = arith.addi %13, %16 : vector<1x36xi32>
    %c0_i32 = arith.constant 0 : i32
    %18 = vector.broadcast %c0_i32 : i32 to vector<1x36xi32>
    %19 = arith.cmpi sge, %17, %18 : vector<1x36xi32>
    %c8_i32_10 = arith.constant 8 : i32
    %20 = vector.broadcast %c8_i32_10 : i32 to vector<1x36xi32>
    %21 = arith.cmpi slt, %17, %20 : vector<1x36xi32>
    %22 = arith.andi %19, %21 : vector<1x36xi1>
    %cst_11 = arith.constant 0.000000e+00 : f32
    %23 = vector.broadcast %cst_11 : f32 to vector<8x36xf32>
    %24 = vector.shape_cast %22 : vector<1x36xi1> to vector<1x36xi1>
    %25 = vector.broadcast %24 : vector<1x36xi1> to vector<8x36xi1>
    %26 = arith.select %25, %12, %23 : vector<8x36xi1>, vector<8x36xf32>
    %27 = vector.extract_strided_slice %26 {offsets = [0, 14], sizes = [8, 8], strides = [1, 1]} : vector<8x36xf32> to vector<8x8xf32>
    %cst_12 = arith.constant 0.000000e+00 : f32
    %28 = vector.broadcast %cst_12 : f32 to vector<2x32xf32>
    %29 = vector.extract_strided_slice %26 {offsets = [0, 0], sizes = [8, 32], strides = [1, 1]} : vector<8x36xf32> to vector<8x32xf32>
    %30 = arith.truncf %29 : vector<8x32xf32> to vector<8x32xbf16>
    %c0_13 = arith.constant 0 : index
    %c0_14 = arith.constant 0 : index
    %c0_15 = arith.constant 0 : index
    %31 = vector.load %arg4[%c0_13, %c0_14, %c0_15] : memref<3x2x8xbf16, #tpu.memory_space<vmem>>, vector<1x2x8xbf16>
    %32 = vector.shape_cast %31 : vector<1x2x8xbf16> to vector<2x8xbf16>
    %cst_16 = arith.constant dense<0.000000e+00> : vector<2x32xf32>
    %33 = tpu.matmul %32, %30, %cst_16 {dimension_numbers = #tpu.dot_dimension_numbers<[1], [0], [0], [1], [0, 0, 1, 1], [], []>} : vector<2x8xbf16>, vector<8x32xbf16>, vector<2x32xf32> -> vector<2x32xf32>
    %34 = arith.addf %28, %33 : vector<2x32xf32>
    %35 = vector.extract_strided_slice %26 {offsets = [0, 2], sizes = [8, 32], strides = [1, 1]} : vector<8x36xf32> to vector<8x32xf32>
    %36 = arith.truncf %35 : vector<8x32xf32> to vector<8x32xbf16>
    %c1 = arith.constant 1 : index
    %c0_17 = arith.constant 0 : index
    %c0_18 = arith.constant 0 : index
    %37 = vector.load %arg4[%c1, %c0_17, %c0_18] : memref<3x2x8xbf16, #tpu.memory_space<vmem>>, vector<1x2x8xbf16>
    %38 = vector.shape_cast %37 : vector<1x2x8xbf16> to vector<2x8xbf16>
    %cst_19 = arith.constant dense<0.000000e+00> : vector<2x32xf32>
    %39 = tpu.matmul %38, %36, %cst_19 {dimension_numbers = #tpu.dot_dimension_numbers<[1], [0], [0], [1], [0, 0, 1, 1], [], []>} : vector<2x8xbf16>, vector<8x32xbf16>, vector<2x32xf32> -> vector<2x32xf32>
    %40 = arith.addf %34, %39 : vector<2x32xf32>
    %41 = vector.extract_strided_slice %26 {offsets = [0, 4], sizes = [8, 32], strides = [1, 1]} : vector<8x36xf32> to vector<8x32xf32>
    %42 = arith.truncf %41 : vector<8x32xf32> to vector<8x32xbf16>
    %c2 = arith.constant 2 : index
    %c0_20 = arith.constant 0 : index
    %c0_21 = arith.constant 0 : index
    %43 = vector.load %arg4[%c2, %c0_20, %c0_21] : memref<3x2x8xbf16, #tpu.memory_space<vmem>>, vector<1x2x8xbf16>
    %44 = vector.shape_cast %43 : vector<1x2x8xbf16> to vector<2x8xbf16>
    %cst_22 = arith.constant dense<0.000000e+00> : vector<2x32xf32>
    %45 = tpu.matmul %44, %42, %cst_22 {dimension_numbers = #tpu.dot_dimension_numbers<[1], [0], [0], [1], [0, 0, 1, 1], [], []>} : vector<2x8xbf16>, vector<8x32xbf16>, vector<2x32xf32> -> vector<2x32xf32>
    %46 = arith.addf %40, %45 : vector<2x32xf32>
    %c0_23 = arith.constant 0 : index
    %c0_24 = arith.constant 0 : index
    %47 = vector.load %arg8[%c0_23, %c0_24] : memref<2x1xf32, #tpu.memory_space<vmem>>, vector<2x1xf32>
    %48 = vector.broadcast %47 : vector<2x1xf32> to vector<2x32xf32>
    %49 = arith.addf %46, %48 : vector<2x32xf32>
    %c0_25 = arith.constant 0 : index
    %c0_26 = arith.constant 0 : index
    %50 = vector.load %arg12[%c0_25, %c0_26] : memref<2x1xf32, #tpu.memory_space<vmem>>, vector<2x1xf32>
    %cst_27 = arith.constant 0.000000e+00 : f32
    %51 = vector.broadcast %cst_27 : f32 to vector<2x32xf32>
    %52 = arith.cmpf oge, %49, %51 : vector<2x32xf32>
    %53 = vector.broadcast %50 : vector<2x1xf32> to vector<2x32xf32>
    %54 = arith.mulf %49, %53 : vector<2x32xf32>
    %55 = arith.select %52, %49, %54 : vector<2x32xi1>, vector<2x32xf32>
    %56 = tpu.iota {dimensions = array<i32: 1>} : vector<1x32xi32>
    %c8_i32_28 = arith.constant 8 : i32
    %57 = arith.muli %arg1, %c8_i32_28 : i32
    %c12_i32 = arith.constant 12 : i32
    %58 = arith.subi %57, %c12_i32 : i32
    %59 = vector.broadcast %58 : i32 to vector<1x32xi32>
    %60 = arith.addi %56, %59 : vector<1x32xi32>
    %c0_i32_29 = arith.constant 0 : i32
    %61 = vector.broadcast %c0_i32_29 : i32 to vector<1x32xi32>
    %62 = arith.cmpi sge, %60, %61 : vector<1x32xi32>
    %c8_i32_30 = arith.constant 8 : i32
    %63 = vector.broadcast %c8_i32_30 : i32 to vector<1x32xi32>
    %64 = arith.cmpi slt, %60, %63 : vector<1x32xi32>
    %65 = arith.andi %62, %64 : vector<1x32xi1>
    %cst_31 = arith.constant 0.000000e+00 : f32
    %66 = vector.broadcast %cst_31 : f32 to vector<2x32xf32>
    %67 = vector.shape_cast %65 : vector<1x32xi1> to vector<1x32xi1>
    %68 = vector.broadcast %67 : vector<1x32xi1> to vector<2x32xi1>
    %69 = arith.select %68, %55, %66 : vector<2x32xi1>, vector<2x32xf32>
    %cst_32 = arith.constant 0.000000e+00 : f32
    %70 = vector.broadcast %cst_32 : f32 to vector<2x24xf32>
    %71 = vector.extract_strided_slice %69 {offsets = [0, 0], sizes = [2, 24], strides = [1, 1]} : vector<2x32xf32> to vector<2x24xf32>
    %72 = arith.truncf %71 : vector<2x24xf32> to vector<2x24xbf16>
    %c0_33 = arith.constant 0 : index
    %c0_34 = arith.constant 0 : index
    %c0_35 = arith.constant 0 : index
    %73 = vector.load %arg5[%c0_33, %c0_34, %c0_35] : memref<3x2x2xbf16, #tpu.memory_space<vmem>>, vector<1x2x2xbf16>
    %74 = vector.shape_cast %73 : vector<1x2x2xbf16> to vector<2x2xbf16>
    %cst_36 = arith.constant dense<0.000000e+00> : vector<2x24xf32>
    %75 = tpu.matmul %74, %72, %cst_36 {dimension_numbers = #tpu.dot_dimension_numbers<[1], [0], [0], [1], [0, 0, 1, 1], [], []>} : vector<2x2xbf16>, vector<2x24xbf16>, vector<2x24xf32> -> vector<2x24xf32>
    %76 = arith.addf %70, %75 : vector<2x24xf32>
    %77 = vector.extract_strided_slice %69 {offsets = [0, 4], sizes = [2, 24], strides = [1, 1]} : vector<2x32xf32> to vector<2x24xf32>
    %78 = arith.truncf %77 : vector<2x24xf32> to vector<2x24xbf16>
    %c1_37 = arith.constant 1 : index
    %c0_38 = arith.constant 0 : index
    %c0_39 = arith.constant 0 : index
    %79 = vector.load %arg5[%c1_37, %c0_38, %c0_39] : memref<3x2x2xbf16, #tpu.memory_space<vmem>>, vector<1x2x2xbf16>
    %80 = vector.shape_cast %79 : vector<1x2x2xbf16> to vector<2x2xbf16>
    %cst_40 = arith.constant dense<0.000000e+00> : vector<2x24xf32>
    %81 = tpu.matmul %80, %78, %cst_40 {dimension_numbers = #tpu.dot_dimension_numbers<[1], [0], [0], [1], [0, 0, 1, 1], [], []>} : vector<2x2xbf16>, vector<2x24xbf16>, vector<2x24xf32> -> vector<2x24xf32>
    %82 = arith.addf %76, %81 : vector<2x24xf32>
    %83 = vector.extract_strided_slice %69 {offsets = [0, 8], sizes = [2, 24], strides = [1, 1]} : vector<2x32xf32> to vector<2x24xf32>
    %84 = arith.truncf %83 : vector<2x24xf32> to vector<2x24xbf16>
    %c2_41 = arith.constant 2 : index
    %c0_42 = arith.constant 0 : index
    %c0_43 = arith.constant 0 : index
    %85 = vector.load %arg5[%c2_41, %c0_42, %c0_43] : memref<3x2x2xbf16, #tpu.memory_space<vmem>>, vector<1x2x2xbf16>
    %86 = vector.shape_cast %85 : vector<1x2x2xbf16> to vector<2x2xbf16>
    %cst_44 = arith.constant dense<0.000000e+00> : vector<2x24xf32>
    %87 = tpu.matmul %86, %84, %cst_44 {dimension_numbers = #tpu.dot_dimension_numbers<[1], [0], [0], [1], [0, 0, 1, 1], [], []>} : vector<2x2xbf16>, vector<2x24xbf16>, vector<2x24xf32> -> vector<2x24xf32>
    %88 = arith.addf %82, %87 : vector<2x24xf32>
    %c0_45 = arith.constant 0 : index
    %c0_46 = arith.constant 0 : index
    %89 = vector.load %arg9[%c0_45, %c0_46] : memref<2x1xf32, #tpu.memory_space<vmem>>, vector<2x1xf32>
    %90 = vector.broadcast %89 : vector<2x1xf32> to vector<2x24xf32>
    %91 = arith.addf %88, %90 : vector<2x24xf32>
    %c0_47 = arith.constant 0 : index
    %c0_48 = arith.constant 0 : index
    %92 = vector.load %arg13[%c0_47, %c0_48] : memref<2x1xf32, #tpu.memory_space<vmem>>, vector<2x1xf32>
    %cst_49 = arith.constant 0.000000e+00 : f32
    %93 = vector.broadcast %cst_49 : f32 to vector<2x24xf32>
    %94 = arith.cmpf oge, %91, %93 : vector<2x24xf32>
    %95 = vector.broadcast %92 : vector<2x1xf32> to vector<2x24xf32>
    %96 = arith.mulf %91, %95 : vector<2x24xf32>
    %97 = arith.select %94, %91, %96 : vector<2x24xi1>, vector<2x24xf32>
    %98 = tpu.iota {dimensions = array<i32: 1>} : vector<1x24xi32>
    %c8_i32_50 = arith.constant 8 : i32
    %99 = arith.muli %arg1, %c8_i32_50 : i32
    %c8_i32_51 = arith.constant 8 : i32
    %100 = arith.subi %99, %c8_i32_51 : i32
    %101 = vector.broadcast %100 : i32 to vector<1x24xi32>
    %102 = arith.addi %98, %101 : vector<1x24xi32>
    %c0_i32_52 = arith.constant 0 : i32
    %103 = vector.broadcast %c0_i32_52 : i32 to vector<1x24xi32>
    %104 = arith.cmpi sge, %102, %103 : vector<1x24xi32>
    %c8_i32_53 = arith.constant 8 : i32
    %105 = vector.broadcast %c8_i32_53 : i32 to vector<1x24xi32>
    %106 = arith.cmpi slt, %102, %105 : vector<1x24xi32>
    %107 = arith.andi %104, %106 : vector<1x24xi1>
    %cst_54 = arith.constant 0.000000e+00 : f32
    %108 = vector.broadcast %cst_54 : f32 to vector<2x24xf32>
    %109 = vector.shape_cast %107 : vector<1x24xi1> to vector<1x24xi1>
    %110 = vector.broadcast %109 : vector<1x24xi1> to vector<2x24xi1>
    %111 = arith.select %110, %97, %108 : vector<2x24xi1>, vector<2x24xf32>
    %cst_55 = arith.constant 0.000000e+00 : f32
    %112 = vector.broadcast %cst_55 : f32 to vector<8x8xf32>
    %113 = vector.extract_strided_slice %111 {offsets = [0, 0], sizes = [2, 8], strides = [1, 1]} : vector<2x24xf32> to vector<2x8xf32>
    %114 = arith.truncf %113 : vector<2x8xf32> to vector<2x8xbf16>
    %c0_56 = arith.constant 0 : index
    %c0_57 = arith.constant 0 : index
    %c0_58 = arith.constant 0 : index
    %115 = vector.load %arg6[%c0_56, %c0_57, %c0_58] : memref<3x8x2xbf16, #tpu.memory_space<vmem>>, vector<1x8x2xbf16>
    %116 = vector.shape_cast %115 : vector<1x8x2xbf16> to vector<8x2xbf16>
    %cst_59 = arith.constant dense<0.000000e+00> : vector<8x8xf32>
    %117 = tpu.matmul %116, %114, %cst_59 {dimension_numbers = #tpu.dot_dimension_numbers<[1], [0], [0], [1], [0, 0, 1, 1], [], []>} : vector<8x2xbf16>, vector<2x8xbf16>, vector<8x8xf32> -> vector<8x8xf32>
    %118 = arith.addf %112, %117 : vector<8x8xf32>
    %119 = vector.extract_strided_slice %111 {offsets = [0, 8], sizes = [2, 8], strides = [1, 1]} : vector<2x24xf32> to vector<2x8xf32>
    %120 = arith.truncf %119 : vector<2x8xf32> to vector<2x8xbf16>
    %c1_60 = arith.constant 1 : index
    %c0_61 = arith.constant 0 : index
    %c0_62 = arith.constant 0 : index
    %121 = vector.load %arg6[%c1_60, %c0_61, %c0_62] : memref<3x8x2xbf16, #tpu.memory_space<vmem>>, vector<1x8x2xbf16>
    %122 = vector.shape_cast %121 : vector<1x8x2xbf16> to vector<8x2xbf16>
    %cst_63 = arith.constant dense<0.000000e+00> : vector<8x8xf32>
    %123 = tpu.matmul %122, %120, %cst_63 {dimension_numbers = #tpu.dot_dimension_numbers<[1], [0], [0], [1], [0, 0, 1, 1], [], []>} : vector<8x2xbf16>, vector<2x8xbf16>, vector<8x8xf32> -> vector<8x8xf32>
    %124 = arith.addf %118, %123 : vector<8x8xf32>
    %125 = vector.extract_strided_slice %111 {offsets = [0, 16], sizes = [2, 8], strides = [1, 1]} : vector<2x24xf32> to vector<2x8xf32>
    %126 = arith.truncf %125 : vector<2x8xf32> to vector<2x8xbf16>
    %c2_64 = arith.constant 2 : index
    %c0_65 = arith.constant 0 : index
    %c0_66 = arith.constant 0 : index
    %127 = vector.load %arg6[%c2_64, %c0_65, %c0_66] : memref<3x8x2xbf16, #tpu.memory_space<vmem>>, vector<1x8x2xbf16>
    %128 = vector.shape_cast %127 : vector<1x8x2xbf16> to vector<8x2xbf16>
    %cst_67 = arith.constant dense<0.000000e+00> : vector<8x8xf32>
    %129 = tpu.matmul %128, %126, %cst_67 {dimension_numbers = #tpu.dot_dimension_numbers<[1], [0], [0], [1], [0, 0, 1, 1], [], []>} : vector<8x2xbf16>, vector<2x8xbf16>, vector<8x8xf32> -> vector<8x8xf32>
    %130 = arith.addf %124, %129 : vector<8x8xf32>
    %c0_68 = arith.constant 0 : index
    %c0_69 = arith.constant 0 : index
    %131 = vector.load %arg10[%c0_68, %c0_69] : memref<8x1xf32, #tpu.memory_space<vmem>>, vector<8x1xf32>
    %132 = vector.broadcast %131 : vector<8x1xf32> to vector<8x8xf32>
    %133 = arith.addf %130, %132 : vector<8x8xf32>
    %c0_70 = arith.constant 0 : index
    %c0_71 = arith.constant 0 : index
    %134 = vector.load %arg14[%c0_70, %c0_71] : memref<8x1xf32, #tpu.memory_space<vmem>>, vector<8x1xf32>
    %cst_72 = arith.constant 0.000000e+00 : f32
    %135 = vector.broadcast %cst_72 : f32 to vector<8x8xf32>
    %136 = arith.cmpf oge, %133, %135 : vector<8x8xf32>
    %137 = vector.broadcast %134 : vector<8x1xf32> to vector<8x8xf32>
    %138 = arith.mulf %133, %137 : vector<8x8xf32>
    %139 = arith.select %136, %133, %138 : vector<8x8xi1>, vector<8x8xf32>
    %140 = arith.addf %139, %27 : vector<8x8xf32>
    %c0_73 = arith.constant 0 : index
    %c0_74 = arith.constant 0 : index
    %c0_75 = arith.constant 0 : index
    %141 = vector.load %arg15[%c0_73, %c0_74, %c0_75] : memref<1x8x8xf32, #tpu.memory_space<vmem>>, vector<1x8x8xf32>
    %142 = vector.shape_cast %141 : vector<1x8x8xf32> to vector<8x8xf32>
    %143 = vector.shape_cast %140 : vector<8x8xf32> to vector<1x8x8xf32>
    tpu.vector_store %arg15[%c0_73, %c0_74, %c0_75], %143 {strides = array<i32>} : memref<1x8x8xf32, #tpu.memory_space<vmem>>, vector<1x8x8xf32>,
    return
  }
  func.func @transform_0(%arg0: i32, %arg1: i32) -> (i32, i32, i32, i32) {
    %c0_i32 = arith.constant 0 : i32
    %c0_i32_0 = arith.constant 0 : i32
    %c0_i32_1 = arith.constant 0 : i32
    return %arg0, %arg1, %c0_i32, %c0_i32_0 : i32, i32, i32, i32
  }
  func.func @transform_1(%arg0: i32, %arg1: i32) -> (i32, i32) {
    %c0_i32 = arith.constant 0 : i32
    %c0_i32_0 = arith.constant 0 : i32
    %c0_i32_1 = arith.constant 0 : i32
    return %c0_i32, %c0_i32_0 : i32, i32
  }
  func.func @transform_2(%arg0: i32, %arg1: i32) -> (i32, i32, i32) {
    %c0_i32 = arith.constant 0 : i32
    %c0_i32_0 = arith.constant 0 : i32
    %c0_i32_1 = arith.constant 0 : i32
    %c0_i32_2 = arith.constant 0 : i32
    return %c0_i32, %c0_i32_0, %c0_i32_1 : i32, i32, i32
  }
  func.func @transform_3(%arg0: i32, %arg1: i32) -> (i32, i32, i32) {
    %c0_i32 = arith.constant 0 : i32
    %c0_i32_0 = arith.constant 0 : i32
    %c0_i32_1 = arith.constant 0 : i32
    %c0_i32_2 = arith.constant 0 : i32
    return %c0_i32, %c0_i32_0, %c0_i32_1 : i32, i32, i32
  }
  func.func @transform_4(%arg0: i32, %arg1: i32) -> (i32, i32, i32) {
    %c0_i32 = arith.constant 0 : i32
    %c0_i32_0 = arith.constant 0 : i32
    %c0_i32_1 = arith.constant 0 : i32
    %c0_i32_2 = arith.constant 0 : i32
    return %c0_i32, %c0_i32_0, %c0_i32_1 : i32, i32, i32
  }
  func.func @transform_5(%arg0: i32, %arg1: i32) -> (i32, i32) {
    %c0_i32 = arith.constant 0 : i32
    %c0_i32_0 = arith.constant 0 : i32
    %c0_i32_1 = arith.constant 0 : i32
    return %c0_i32, %c0_i32_0 : i32, i32
  }
  func.func @transform_6(%arg0: i32, %arg1: i32) -> (i32, i32) {
    %c0_i32 = arith.constant 0 : i32
    %c0_i32_0 = arith.constant 0 : i32
    %c0_i32_1 = arith.constant 0 : i32
    return %c0_i32, %c0_i32_0 : i32, i32
  }
  func.func @transform_7(%arg0: i32, %arg1: i32) -> (i32, i32) {
    %c0_i32 = arith.constant 0 : i32
    %c0_i32_0 = arith.constant 0 : i32
    %c0_i32_1 = arith.constant 0 : i32
    return %c0_i32, %c0_i32_0 : i32, i32
  }
  func.func @transform_8(%arg0: i32, %arg1: i32) -> (i32, i32) {
    %c0_i32 = arith.constant 0 : i32
    %c0_i32_0 = arith.constant 0 : i32
    %c0_i32_1 = arith.constant 0 : i32
    return %c0_i32, %c0_i32_0 : i32, i32
  }
  func.func @transform_9(%arg0: i32, %arg1: i32) -> (i32, i32) {
    %c0_i32 = arith.constant 0 : i32
    %c0_i32_0 = arith.constant 0 : i32
    %c0_i32_1 = arith.constant 0 : i32
    return %c0_i32, %c0_i32_0 : i32, i32
  }
  func.func @transform_10(%arg0: i32, %arg1: i32) -> (i32, i32) {
    %c0_i32 = arith.constant 0 : i32
    %c0_i32_0 = arith.constant 0 : i32
    %c0_i32_1 = arith.constant 0 : i32
    return %c0_i32, %c0_i32_0 : i32, i32
  }
  func.func @transform_11(%arg0: i32, %arg1: i32) -> (i32, i32) {
    %c0_i32 = arith.constant 0 : i32
    %c0_i32_0 = arith.constant 0 : i32
    %c0_i32_1 = arith.constant 0 : i32
    return %c0_i32, %c0_i32_0 : i32, i32
  }
  func.func @transform_12(%arg0: i32, %arg1: i32) -> (i32, i32) {
    %c0_i32 = arith.constant 0 : i32
    %c0_i32_0 = arith.constant 0 : i32
    %c0_i32_1 = arith.constant 0 : i32
    return %c0_i32, %c0_i32_0 : i32, i32
  }
  func.func @transform_13(%arg0: i32, %arg1: i32) -> (i32, i32, i32) {
    %c0_i32 = arith.constant 0 : i32
    %c0_i32_0 = arith.constant 0 : i32
    return %arg0, %c0_i32, %arg1 : i32, i32, i32
  }
}

</mosaic_0001>

<llo_original>
// kernel: tpu_custom_call.1
$region0: #{tpu_custom_call.1}
  #allocation0 [shape = 'u32[]', space=smem, size = 0x4, offset = 0x4, fixed_abs, tag = 'smem constant byte address 0x4 - core index']
  #allocation1 [shape = 'u32[72,128]{1,0:T(1,128)}', space=vmem, size = 0x9000, scoped, tag = 'internal scratch']
  %s0 = inlined_call_operand.vmem [shape: bf16[2,1,12,36], index: 0, kind: input, shape index: {}]
  %s1 = inlined_call_operand.vmem [shape: bf16[8,12], index: 1, kind: input, shape index: {}]
  %s2 = inlined_call_operand.vmem [shape: bf16[3,2,8], index: 2, kind: input, shape index: {}]
  %s3 = inlined_call_operand.vmem [shape: bf16[3,2,2], index: 3, kind: input, shape index: {}]
  %s4 = inlined_call_operand.vmem [shape: bf16[3,8,2], index: 4, kind: input, shape index: {}]
  %s5 = inlined_call_operand.vmem [shape: f32[8,1], index: 5, kind: input, shape index: {}]
  %s6 = inlined_call_operand.vmem [shape: f32[2,1], index: 6, kind: input, shape index: {}]
  %s7 = inlined_call_operand.vmem [shape: f32[2,1], index: 7, kind: input, shape index: {}]
  %s8 = inlined_call_operand.vmem [shape: f32[8,1], index: 8, kind: input, shape index: {}]
  %s9 = inlined_call_operand.vmem [shape: f32[8,1], index: 9, kind: input, shape index: {}]
  %s10 = inlined_call_operand.vmem [shape: f32[2,1], index: 10, kind: input, shape index: {}]
  %s11 = inlined_call_operand.vmem [shape: f32[2,1], index: 11, kind: input, shape index: {}]
  %s12 = inlined_call_operand.vmem [shape: f32[8,1], index: 12, kind: input, shape index: {}]
  %s13 = inlined_call_operand.hbm [shape: f32[2,8,8], index: 13, kind: output, shape index: {}]
  %s14 = sld [smem:[#allocation0]]
  $region85: #{tpu_custom_call.1} parent=0
    _
  %s16 = ssub.s32 1, %s14
  %s17 = scalar_select 0, %s16, %s14
  $region1: #{tpu_custom_call.1} parent=0
    #allocation2 [shape = 'u8[8192]{0}', space=vmem, size = 0x2000, scoped, tag = 'output window, operand 0']
    #allocation3 [shape = 's32[2]{0}', space=sflag, size = 0x8, scoped, tag = 'scoped memory for tpu_custom_call.1']
    %18 = vsyncpa [#allocation3], 0
    %s19 = scalar_lea.sflag [#allocation3], 1
    %20 = vsyncpa %s19, 0
    loop: start=0, step=1, limit=4
    $region2: #{tpu_custom_call.1} parent=1 // loop_pre_header
      _
    $region3: #{tpu_custom_call.1} parent=1 // loop_header
      %s22 = sphi 0, %s26
      %p23 = scmp.ge.s32.totalorder %s22, 4
      %s29 = sphi 0, %s41
      %s30 = sphi 0, %s37
      %s31 = sphi 0, %s29
      %s32 = sphi 0, %s30
      %s33 = sphi 0, %s31
      %s34 = sphi 0, %s32
      %s46 = sphi 0, %s48
      %s49 = sphi 0, %s46
      %s50 = sphi 0, %s49
      %s66 = sphi 0, %s50
      %s70 = sphi 0, %s70
      %s72 = sphi 0, %s70
      %s73 = sphi 0, %s72
      %s87 = sphi 0, %s73
      %s91 = sphi 0, %s91
      %s93 = sphi 0, %s91
      %s94 = sphi 0, %s93
      %s108 = sphi 0, %s94
      %s112 = sphi 0, %s112
      %s114 = sphi 0, %s112
      %s115 = sphi 0, %s114
      %s129 = sphi 0, %s115
      %s133 = sphi 0, %s133
      %s135 = sphi 0, %s133
      %s136 = sphi 0, %s135
      %s150 = sphi 0, %s136
      %s154 = sphi 0, %s154
      %s156 = sphi 0, %s154
      %s157 = sphi 0, %s156
      %s171 = sphi 0, %s157
      %s175 = sphi 0, %s175
      %s177 = sphi 0, %s175
      %s178 = sphi 0, %s177
      %s192 = sphi 0, %s178
      %s196 = sphi 0, %s196
      %s198 = sphi 0, %s196
      %s199 = sphi 0, %s198
      %s213 = sphi 0, %s199
      %s217 = sphi 0, %s217
      %s219 = sphi 0, %s217
      %s220 = sphi 0, %s219
      %s234 = sphi 0, %s220
      %s238 = sphi 0, %s238
      %s240 = sphi 0, %s238
      %s241 = sphi 0, %s240
      %s255 = sphi 0, %s241
      %s259 = sphi 0, %s259
      %s261 = sphi 0, %s259
      %s262 = sphi 0, %s261
      %s276 = sphi 0, %s262
      %s280 = sphi 0, %s280
      %s282 = sphi 0, %s280
      %s283 = sphi 0, %s282
      %s297 = sphi 0, %s283
      %s301 = sphi 0, %s301
      %s303 = sphi 0, %s301
      %s304 = sphi 0, %s303
      %s318 = sphi 0, %s304
      %s326 = sphi 0, %s328
      %s329 = sphi 0, %s326
      %s330 = sphi 0, %s329
      %s346 = sphi 0, %s330
    $region4: #{tpu_custom_call.1} parent=1 // loop_header_branch
      %25 = sbr.rel (%p23) target = $region8
    $region5: #{tpu_custom_call.1} parent=1 // loop_body
      %s27 = ssub.s32 %s22, 1
      %s28 = ssub.s32 %s22, 2
      %s35 = sadd.s32 1, %s30
      %p36 = scmp.ge.s32.totalorder %s35, 1
      %s37 = scalar_select %p36, 0, %s35
      %s38 = sadd.s32 1, %s29
      %s39 = scalar_select %p36, %s38, %s29
      %p40 = scmp.ge.s32.totalorder %s39, 2
      %s41 = scalar_select %p40, 0, %s39
      %s42 = ssub.s32 %s29, %s41
      %s43 = ssub.s32 %s30, %s37
      %s44 = sor.u32 %s42, %s43
      %p45 = scmp.eq.s32.totalorder %s44, 0
      %s47 = sadd.s32 %s46, 1
      %s48 = scalar_select %p45, %s46, %s47
      %p51 = pneg %p45
      %p52 = scmp.eq.s32.totalorder %s22, 1
      %p53 = por %p51, %p52
      %p54 = scmp.ne.s32.totalorder %s46, %s49
      %p55 = scmp.eq.s32.totalorder %s22, 0
      %p56 = por %p54, %p55
      %p57 = scmp.ne.s32.totalorder %s46, %s49
      %p58 = scmp.eq.s32.totalorder %s27, 1
      %p59 = por %p57, %p58
      %p60 = scmp.ne.s32.totalorder %s49, %s50
      %p61 = scmp.eq.s32.totalorder %s27, 0
      %p62 = por %p60, %p61
      %p63 = scmp.ne.s32.totalorder %s49, %s50
      %p64 = scmp.eq.s32.totalorder %s28, 1
      %p65 = por %p63, %p64
      %p67 = scmp.ne.s32.totalorder %s50, %s66
      %p68 = scmp.eq.s32.totalorder %s28, 0
      %p69 = por %p67, %p68
      %s71 = sadd.s32 %s70, 1
      %p74 = scmp.eq.s32.totalorder %s22, 1
      %p75 = scmp.ne.s32.totalorder %s70, %s72
      %p76 = scmp.eq.s32.totalorder %s22, 0
      %p77 = por %p75, %p76
      %p78 = scmp.ne.s32.totalorder %s70, %s72
      %p79 = scmp.eq.s32.totalorder %s27, 1
      %p80 = por %p78, %p79
      %p81 = scmp.ne.s32.totalorder %s72, %s73
      %p82 = scmp.eq.s32.totalorder %s27, 0
      %p83 = por %p81, %p82
      %p84 = scmp.ne.s32.totalorder %s72, %s73
      %p85 = scmp.eq.s32.totalorder %s28, 1
      %p86 = por %p84, %p85
      %p88 = scmp.ne.s32.totalorder %s73, %s87
      %p89 = scmp.eq.s32.totalorder %s28, 0
      %p90 = por %p88, %p89
      %s92 = sadd.s32 %s91, 1
      %p95 = scmp.eq.s32.totalorder %s22, 1
      %p96 = scmp.ne.s32.totalorder %s91, %s93
      %p97 = scmp.eq.s32.totalorder %s22, 0
      %p98 = por %p96, %p97
      %p99 = scmp.ne.s32.totalorder %s91, %s93
      %p100 = scmp.eq.s32.totalorder %s27, 1
      %p101 = por %p99, %p100
      %p102 = scmp.ne.s32.totalorder %s93, %s94
      %p103 = scmp.eq.s32.totalorder %s27, 0
      %p104 = por %p102, %p103
      %p105 = scmp.ne.s32.totalorder %s93, %s94
      %p106 = scmp.eq.s32.totalorder %s28, 1
      %p107 = por %p105, %p106
      %p109 = scmp.ne.s32.totalorder %s94, %s108
      %p110 = scmp.eq.s32.totalorder %s28, 0
      %p111 = por %p109, %p110
      %s113 = sadd.s32 %s112, 1
      %p116 = scmp.eq.s32.totalorder %s22, 1
      %p117 = scmp.ne.s32.totalorder %s112, %s114
      %p118 = scmp.eq.s32.totalorder %s22, 0
      %p119 = por %p117, %p118
      %p120 = scmp.ne.s32.totalorder %s112, %s114
      %p121 = scmp.eq.s32.totalorder %s27, 1
      %p122 = por %p120, %p121
      %p123 = scmp.ne.s32.totalorder %s114, %s115
      %p124 = scmp.eq.s32.totalorder %s27, 0
      %p125 = por %p123, %p124
      %p126 = scmp.ne.s32.totalorder %s114, %s115
      %p127 = scmp.eq.s32.totalorder %s28, 1
      %p128 = por %p126, %p127
      %p130 = scmp.ne.s32.totalorder %s115, %s129
      %p131 = scmp.eq.s32.totalorder %s28, 0
      %p132 = por %p130, %p131
      %s134 = sadd.s32 %s133, 1
      %p137 = scmp.eq.s32.totalorder %s22, 1
      %p138 = scmp.ne.s32.totalorder %s133, %s135
      %p139 = scmp.eq.s32.totalorder %s22, 0
      %p140 = por %p138, %p139
      %p141 = scmp.ne.s32.totalorder %s133, %s135
      %p142 = scmp.eq.s32.totalorder %s27, 1
      %p143 = por %p141, %p142
      %p144 = scmp.ne.s32.totalorder %s135, %s136
      %p145 = scmp.eq.s32.totalorder %s27, 0
      %p146 = por %p144, %p145
      %p147 = scmp.ne.s32.totalorder %s135, %s136
      %p148 = scmp.eq.s32.totalorder %s28, 1
      %p149 = por %p147, %p148
      %p151 = scmp.ne.s32.totalorder %s136, %s150
      %p152 = scmp.eq.s32.totalorder %s28, 0
      %p153 = por %p151, %p152
      %s155 = sadd.s32 %s154, 1
      %p158 = scmp.eq.s32.totalorder %s22, 1
      %p159 = scmp.ne.s32.totalorder %s154, %s156
      %p160 = scmp.eq.s32.totalorder %s22, 0
      %p161 = por %p159, %p160
      %p162 = scmp.ne.s32.totalorder %s154, %s156
      %p163 = scmp.eq.s32.totalorder %s27, 1
      %p164 = por %p162, %p163
      %p165 = scmp.ne.s32.totalorder %s156, %s157
      %p166 = scmp.eq.s32.totalorder %s27, 0
      %p167 = por %p165, %p166
      %p168 = scmp.ne.s32.totalorder %s156, %s157
      %p169 = scmp.eq.s32.totalorder %s28, 1
      %p170 = por %p168, %p169
      %p172 = scmp.ne.s32.totalorder %s157, %s171
      %p173 = scmp.eq.s32.totalorder %s28, 0
      %p174 = por %p172, %p173
      %s176 = sadd.s32 %s175, 1
      %p179 = scmp.eq.s32.totalorder %s22, 1
      %p180 = scmp.ne.s32.totalorder %s175, %s177
      %p181 = scmp.eq.s32.totalorder %s22, 0
      %p182 = por %p180, %p181
      %p183 = scmp.ne.s32.totalorder %s175, %s177
      %p184 = scmp.eq.s32.totalorder %s27, 1
      %p185 = por %p183, %p184
      %p186 = scmp.ne.s32.totalorder %s177, %s178
      %p187 = scmp.eq.s32.totalorder %s27, 0
      %p188 = por %p186, %p187
      %p189 = scmp.ne.s32.totalorder %s177, %s178
      %p190 = scmp.eq.s32.totalorder %s28, 1
      %p191 = por %p189, %p190
      %p193 = scmp.ne.s32.totalorder %s178, %s192
      %p194 = scmp.eq.s32.totalorder %s28, 0
      %p195 = por %p193, %p194
      %s197 = sadd.s32 %s196, 1
      %p200 = scmp.eq.s32.totalorder %s22, 1
      %p201 = scmp.ne.s32.totalorder %s196, %s198
      %p202 = scmp.eq.s32.totalorder %s22, 0
      %p203 = por %p201, %p202
      %p204 = scmp.ne.s32.totalorder %s196, %s198
      %p205 = scmp.eq.s32.totalorder %s27, 1
      %p206 = por %p204, %p205
      %p207 = scmp.ne.s32.totalorder %s198, %s199
      %p208 = scmp.eq.s32.totalorder %s27, 0
      %p209 = por %p207, %p208
      %p210 = scmp.ne.s32.totalorder %s198, %s199
      %p211 = scmp.eq.s32.totalorder %s28, 1
      %p212 = por %p210, %p211
      %p214 = scmp.ne.s32.totalorder %s199, %s213
      %p215 = scmp.eq.s32.totalorder %s28, 0
      %p216 = por %p214, %p215
      %s218 = sadd.s32 %s217, 1
      %p221 = scmp.eq.s32.totalorder %s22, 1
      %p222 = scmp.ne.s32.totalorder %s217, %s219
      %p223 = scmp.eq.s32.totalorder %s22, 0
      %p224 = por %p222, %p223
      %p225 = scmp.ne.s32.totalorder %s217, %s219
      %p226 = scmp.eq.s32.totalorder %s27, 1
      %p227 = por %p225, %p226
      %p228 = scmp.ne.s32.totalorder %s219, %s220
      %p229 = scmp.eq.s32.totalorder %s27, 0
      %p230 = por %p228, %p229
      %p231 = scmp.ne.s32.totalorder %s219, %s220
      %p232 = scmp.eq.s32.totalorder %s28, 1
      %p233 = por %p231, %p232
      %p235 = scmp.ne.s32.totalorder %s220, %s234
      %p236 = scmp.eq.s32.totalorder %s28, 0
      %p237 = por %p235, %p236
      %s239 = sadd.s32 %s238, 1
      %p242 = scmp.eq.s32.totalorder %s22, 1
      %p243 = scmp.ne.s32.totalorder %s238, %s240
      %p244 = scmp.eq.s32.totalorder %s22, 0
      %p245 = por %p243, %p244
      %p246 = scmp.ne.s32.totalorder %s238, %s240
      %p247 = scmp.eq.s32.totalorder %s27, 1
      %p248 = por %p246, %p247
      %p249 = scmp.ne.s32.totalorder %s240, %s241
      %p250 = scmp.eq.s32.totalorder %s27, 0
      %p251 = por %p249, %p250
      %p252 = scmp.ne.s32.totalorder %s240, %s241
      %p253 = scmp.eq.s32.totalorder %s28, 1
      %p254 = por %p252, %p253
      %p256 = scmp.ne.s32.totalorder %s241, %s255
      %p257 = scmp.eq.s32.totalorder %s28, 0
      %p258 = por %p256, %p257
      %s260 = sadd.s32 %s259, 1
      %p263 = scmp.eq.s32.totalorder %s22, 1
      %p264 = scmp.ne.s32.totalorder %s259, %s261
      %p265 = scmp.eq.s32.totalorder %s22, 0
      %p266 = por %p264, %p265
      %p267 = scmp.ne.s32.totalorder %s259, %s261
      %p268 = scmp.eq.s32.totalorder %s27, 1
      %p269 = por %p267, %p268
      %p270 = scmp.ne.s32.totalorder %s261, %s262
      %p271 = scmp.eq.s32.totalorder %s27, 0
      %p272 = por %p270, %p271
      %p273 = scmp.ne.s32.totalorder %s261, %s262
      %p274 = scmp.eq.s32.totalorder %s28, 1
      %p275 = por %p273, %p274
      %p277 = scmp.ne.s32.totalorder %s262, %s276
      %p278 = scmp.eq.s32.totalorder %s28, 0
      %p279 = por %p277, %p278
      %s281 = sadd.s32 %s280, 1
      %p284 = scmp.eq.s32.totalorder %s22, 1
      %p285 = scmp.ne.s32.totalorder %s280, %s282
      %p286 = scmp.eq.s32.totalorder %s22, 0
      %p287 = por %p285, %p286
      %p288 = scmp.ne.s32.totalorder %s280, %s282
      %p289 = scmp.eq.s32.totalorder %s27, 1
      %p290 = por %p288, %p289
      %p291 = scmp.ne.s32.totalorder %s282, %s283
      %p292 = scmp.eq.s32.totalorder %s27, 0
      %p293 = por %p291, %p292
      %p294 = scmp.ne.s32.totalorder %s282, %s283
      %p295 = scmp.eq.s32.totalorder %s28, 1
      %p296 = por %p294, %p295
      %p298 = scmp.ne.s32.totalorder %s283, %s297
      %p299 = scmp.eq.s32.totalorder %s28, 0
      %p300 = por %p298, %p299
      %s302 = sadd.s32 %s301, 1
      %p305 = scmp.eq.s32.totalorder %s22, 1
      %p306 = scmp.ne.s32.totalorder %s301, %s303
      %p307 = scmp.eq.s32.totalorder %s22, 0
      %p308 = por %p306, %p307
      %p309 = scmp.ne.s32.totalorder %s301, %s303
      %p310 = scmp.eq.s32.totalorder %s27, 1
      %p311 = por %p309, %p310
      %p312 = scmp.ne.s32.totalorder %s303, %s304
      %p313 = scmp.eq.s32.totalorder %s27, 0
      %p314 = por %p312, %p313
      %p315 = scmp.ne.s32.totalorder %s303, %s304
      %p316 = scmp.eq.s32.totalorder %s28, 1
      %p317 = por %p315, %p316
      %p319 = scmp.ne.s32.totalorder %s304, %s318
      %p320 = scmp.eq.s32.totalorder %s28, 0
      %p321 = por %p319, %p320
      %s322 = ssub.s32 %s29, %s41
      %s323 = ssub.s32 %s30, %s37
      %s324 = sor.u32 %s322, %s323
      %p325 = scmp.eq.s32.totalorder %s324, 0
      %s327 = sadd.s32 %s326, 1
      %s328 = scalar_select %p325, %s326, %s327
      %p331 = pneg %p325
      %p332 = scmp.eq.s32.totalorder %s22, 1
      %p333 = por %p331, %p332
      %p334 = scmp.ne.s32.totalorder %s326, %s329
      %p335 = scmp.eq.s32.totalorder %s22, 0
      %p336 = por %p334, %p335
      %p337 = scmp.ne.s32.totalorder %s326, %s329
      %p338 = scmp.eq.s32.totalorder %s27, 1
      %p339 = por %p337, %p338
      %p340 = scmp.ne.s32.totalorder %s329, %s330
      %p341 = scmp.eq.s32.totalorder %s27, 0
      %p342 = por %p340, %p341
      %p343 = scmp.ne.s32.totalorder %s329, %s330
      %p344 = scmp.eq.s32.totalorder %s28, 1
      %p345 = por %p343, %p344
      %p347 = scmp.ne.s32.totalorder %s330, %s346
      %p348 = scmp.eq.s32.totalorder %s28, 0
      %p349 = por %p347, %p348
      %p350 = scmp.le.s32.totalorder 1, %s22
      %p351 = scmp.lt.s32.totalorder %s22, 3
      %p352 = pnand %p350, %p351
      %p353 = pneg %p352
      // Predicated region
      $region9: #{tpu_custom_call.1} parent=5 // pred_check
        _
      $region10: #{tpu_custom_call.1} parent=5 // pred_check_branch
        %355 = sbr.rel (%p352) target = $region12
      $region11: #{tpu_custom_call.1} parent=5 // pred_region
        %s356 = ssub.s32 %s22, 1
        // Predicated region
        $region13: #{tpu_custom_call.1} parent=11 // pred_check
          %p357 = pneg %p83
        $region14: #{tpu_custom_call.1} parent=11 // pred_check_branch
          %359 = sbr.rel (%p357) target = $region16
        $region15: #{tpu_custom_call.1} parent=11 // pred_region
          _
        $region16: #{tpu_custom_call.1} parent=11 // pred_fallthru
          _
        // Predicated region
        $region17: #{tpu_custom_call.1} parent=11 // pred_check
          %p360 = pneg %p104
        $region18: #{tpu_custom_call.1} parent=11 // pred_check_branch
          %362 = sbr.rel (%p360) target = $region20
        $region19: #{tpu_custom_call.1} parent=11 // pred_region
          _
        $region20: #{tpu_custom_call.1} parent=11 // pred_fallthru
          _
        // Predicated region
        $region21: #{tpu_custom_call.1} parent=11 // pred_check
          %p363 = pneg %p125
        $region22: #{tpu_custom_call.1} parent=11 // pred_check_branch
          %365 = sbr.rel (%p363) target = $region24
        $region23: #{tpu_custom_call.1} parent=11 // pred_region
          _
        $region24: #{tpu_custom_call.1} parent=11 // pred_fallthru
          _
        // Predicated region
        $region25: #{tpu_custom_call.1} parent=11 // pred_check
          %p366 = pneg %p146
        $region26: #{tpu_custom_call.1} parent=11 // pred_check_branch
          %368 = sbr.rel (%p366) target = $region28
        $region27: #{tpu_custom_call.1} parent=11 // pred_region
          _
        $region28: #{tpu_custom_call.1} parent=11 // pred_fallthru
          _
        // Predicated region
        $region29: #{tpu_custom_call.1} parent=11 // pred_check
          %p369 = pneg %p167
        $region30: #{tpu_custom_call.1} parent=11 // pred_check_branch
          %371 = sbr.rel (%p369) target = $region32
        $region31: #{tpu_custom_call.1} parent=11 // pred_region
          _
        $region32: #{tpu_custom_call.1} parent=11 // pred_fallthru
          _
        // Predicated region
        $region33: #{tpu_custom_call.1} parent=11 // pred_check
          %p372 = pneg %p188
        $region34: #{tpu_custom_call.1} parent=11 // pred_check_branch
          %374 = sbr.rel (%p372) target = $region36
        $region35: #{tpu_custom_call.1} parent=11 // pred_region
          _
        $region36: #{tpu_custom_call.1} parent=11 // pred_fallthru
          _
        // Predicated region
        $region37: #{tpu_custom_call.1} parent=11 // pred_check
          %p375 = pneg %p209
        $region38: #{tpu_custom_call.1} parent=11 // pred_check_branch
          %377 = sbr.rel (%p375) target = $region40
        $region39: #{tpu_custom_call.1} parent=11 // pred_region
          _
        $region40: #{tpu_custom_call.1} parent=11 // pred_fallthru
          _
        // Predicated region
        $region41: #{tpu_custom_call.1} parent=11 // pred_check
          %p378 = pneg %p230
        $region42: #{tpu_custom_call.1} parent=11 // pred_check_branch
          %380 = sbr.rel (%p378) target = $region44
        $region43: #{tpu_custom_call.1} parent=11 // pred_region
          _
        $region44: #{tpu_custom_call.1} parent=11 // pred_fallthru
          _
        // Predicated region
        $region45: #{tpu_custom_call.1} parent=11 // pred_check
          %p381 = pneg %p251
        $region46: #{tpu_custom_call.1} parent=11 // pred_check_branch
          %383 = sbr.rel (%p381) target = $region48
        $region47: #{tpu_custom_call.1} parent=11 // pred_region
          _
        $region48: #{tpu_custom_call.1} parent=11 // pred_fallthru
          _
        // Predicated region
        $region49: #{tpu_custom_call.1} parent=11 // pred_check
          %p384 = pneg %p272
        $region50: #{tpu_custom_call.1} parent=11 // pred_check_branch
          %386 = sbr.rel (%p384) target = $region52
        $region51: #{tpu_custom_call.1} parent=11 // pred_region
          _
        $region52: #{tpu_custom_call.1} parent=11 // pred_fallthru
          _
        // Predicated region
        $region53: #{tpu_custom_call.1} parent=11 // pred_check
          %p387 = pneg %p293
        $region54: #{tpu_custom_call.1} parent=11 // pred_check_branch
          %389 = sbr.rel (%p387) target = $region56
        $region55: #{tpu_custom_call.1} parent=11 // pred_region
          _
        $region56: #{tpu_custom_call.1} parent=11 // pred_fallthru
          _
        // Predicated region
        $region57: #{tpu_custom_call.1} parent=11 // pred_check
          %p390 = pneg %p314
        $region58: #{tpu_custom_call.1} parent=11 // pred_check_branch
          %392 = sbr.rel (%p390) target = $region60
        $region59: #{tpu_custom_call.1} parent=11 // pred_region
          _
        $region60: #{tpu_custom_call.1} parent=11 // pred_fallthru
          _
      $region12: #{tpu_custom_call.1} parent=5 // pred_fallthru
        _
      %p393 = scmp.lt.s32.totalorder %s22, 2
      // Predicated region
      $region61: #{tpu_custom_call.1} parent=5 // pred_check
        %p394 = pneg %p393
      $region62: #{tpu_custom_call.1} parent=5 // pred_check_branch
        %396 = sbr.rel (%p394) target = $region64
      $region63: #{tpu_custom_call.1} parent=5 // pred_region
        // Predicated region
        $region65: #{tpu_custom_call.1} parent=63 // pred_check
          %p397 = pneg %p56
        $region66: #{tpu_custom_call.1} parent=63 // pred_check_branch
          %399 = sbr.rel (%p397) target = $region68
        $region67: #{tpu_custom_call.1} parent=63 // pred_region
          %p400 = scmp.lt.s32.totalorder %s29, 1
          %s401 = scalar_select %p400, %s29, 1
          %p402 = scmp.lt.s32.totalorder %s30, 0
          %s403 = scalar_select %p402, %s30, 0
          %s404 = smul.addr %s403, 2
          %s405 = smul.addr %s401, 2
          %s406 = sadd.s32 %s404, %s405
          %s407 = smul.addr %s406, 4
          %s408 = scalar_lea.vmem %s0, %s407
        $region68: #{tpu_custom_call.1} parent=63 // pred_fallthru
          _
      $region64: #{tpu_custom_call.1} parent=5 // pred_fallthru
        _
      %p409 = scmp.le.s32.totalorder 1, %s22
      %p410 = scmp.lt.s32.totalorder %s22, 3
      %p411 = pnand %p409, %p410
      %p412 = pneg %p411
      // Predicated region
      $region69: #{tpu_custom_call.1} parent=5 // pred_check
        _
      $region70: #{tpu_custom_call.1} parent=5 // pred_check_branch
        %414 = sbr.rel (%p411) target = $region72
      $region71: #{tpu_custom_call.1} parent=5 // pred_region
        %s415 = ssub.s32 %s22, 1
        %p416 = scmp.lt.s32.totalorder %s31, 1
        %s417 = scalar_select %p416, %s31, 1
        %p418 = scmp.lt.s32.totalorder %s32, 0
        %s419 = scalar_select %p418, %s32, 0
        %s420 = smul.addr %s419, 2
        %s421 = smul.addr %s417, 2
        %s422 = sadd.s32 %s420, %s421
        %s423 = smul.addr %s422, 4
        %s424 = scalar_lea.vmem %s0, %s423
        %p425 = pneg %p62
        %p426 = pneg %p59
        %p427 = pneg %p83
        %p428 = pneg %p80
        %p429 = pneg %p104
        %p430 = pneg %p101
        %p431 = pneg %p125
        %p432 = pneg %p122
        %p433 = pneg %p146
        %p434 = pneg %p143
        %p435 = pneg %p167
        %p436 = pneg %p164
        %p437 = pneg %p188
        %p438 = pneg %p185
        %p439 = pneg %p209
        %p440 = pneg %p206
        %p441 = pneg %p230
        %p442 = pneg %p227
        %p443 = pneg %p251
        %p444 = pneg %p248
        %p445 = pneg %p272
        %p446 = pneg %p269
        %p447 = pneg %p293
        %p448 = pneg %p290
        %p449 = pneg %p314
        %p450 = pneg %p311
        %p451 = pneg %p342
        %p452 = pneg %p339
        %s453 = sand.u32 %s329, 1
        %s454 = scalar_lea.sflag [#allocation3], %s453
        %s455 = sand.u32 %s329, 1
        %s456 = smul.addr %s455, 8
        %s457 = scalar_lea.vmem [#allocation2], %s456
        %p458 = scmp.lt.s32.totalorder %s31, 1
        %s459 = scalar_select %p458, %s31, 1
        %p460 = scmp.lt.s32.totalorder %s32, 0
        %s461 = scalar_select %p460, %s32, 0
        %s462 = smul.addr %s461, 2
        %s463 = smul.addr %s459, 2
        %s464 = sadd.s32 %s462, %s463
        %s465 = smul.addr %s464, 4
        %s466 = scalar_lea.vmem %s0, %s465
        %v468 = vld [vmem:[%s466] sm:$0xf]
        %v469 = vld [vmem:[%s466 + $0x4] sm:$0x3]
        %v470 = vld [vmem:[%s1] sm:$0xf]
        %v471 = vld [vmem:[%s5] sm:$0xff]
        %473 = vset.pattern.permute.xlu0 0
        %474 = vperm.xlu0 %473, %v471
        %v475 = vpop.permute.xlu0 %474
        %v479 = vunpack.c.l.b16 %v468
        %v480 = vunpack.c.l.b16 %v469
        %v481 = vpack.c.b16 %v480, %v479
        %vm482 = vcmask 97280
        %v484 = vsel %vm482, %v470, 0
        %vm486 = vcmask 1045504
        %v488 = vsel %vm486, %v481, 0
        %490 = vmatpush.bf16.msra.mxu0 0
        %491 = vmatpush.bf16.msra.mxu0 0
        %492 = vmatpush.bf16.msra.mxu0 0
        %493 = vmatpush.bf16.msra.mxu0 0
        %494 = vmatpush.bf16.msra.mxu0 0
        %495 = vmatpush.bf16.msra.mxu0 0
        %496 = vmatpush.bf16.msra.mxu0 0
        %497 = vmatpush.bf16.msra.mxu0 %v488
        %498 = vmatmul.bf16.gmra.mxu0 %v484
        %v499 = vpop.f32.mrf.mxu0
        %v500 = vadd.f32 %v475, %v499
        %v501 = vpop.f32.mrf.mxu0
        %502 = vdwg.mxu0
        %v503 = vld [vmem:[%s9] sm:$0xff]
        %vm504 = vcmp.ge.f32.partialorder %v500, 0.0
        %506 = vset.pattern.permute.xlu0 0
        %507 = vperm.xlu0 %506, %v503
        %v508 = vpop.permute.xlu0 %507
        %v510 = vmul.f32 %v500, %v508
        %v511 = vsel %vm504, %v500, %v510
        %v512 = vlaneseq
        %v513 = vand.u32 %v512, 127
        %s514 = smul.u32 %s32, 8
        %s515 = ssub.s32 %s514, 14
        %v516 = vstv %s515
        %v517 = vadd.s32 %v513, %v516
        %vm518 = vcmp.ge.s32.totalorder %v517, 0
        %vm519 = vcmp.lt.s32.totalorder %v517, 8
        %vm520 = vmand %vm518, %vm519
        %v521 = vsel %vm520, 1, 0
        %vm522 = vcmp.eq.s32.totalorder %v521, 1
        %v523 = vsel %vm522, %v511, 0.0
        %v524 = vpack.c.bf16 %v523, %v523
        %v525 = vld [vmem:[%s2] sm:$0x1]
        %s526 = scalar_lea.vmem %s2, 1
        %v527 = vld [vmem:[%s526] sm:$0x1]
        %529 = vrot.lane.b32.xlu0 %v524, 126
        %v530 = vpop.permute.xlu0 %529
        %vm531 = vcmask 64512
        %v533 = vsel %vm531, %v527, 0
        %vm535 = vcmask 1043456
        %v537 = vsel %vm535, %v530, 0
        %539 = vmatpush.bf16.msra.mxu0 0
        %540 = vmatpush.bf16.msra.mxu0 0
        %541 = vmatpush.bf16.msra.mxu0 0
        %542 = vmatpush.bf16.msra.mxu0 0
        %543 = vmatpush.bf16.msra.mxu0 0
        %544 = vmatpush.bf16.msra.mxu0 0
        %545 = vmatpush.bf16.msra.mxu0 0
        %546 = vmatpush.bf16.msra.mxu0 %v537
        %547 = vmatmul.bf16.gmra.mxu0 %v533
        %v548 = vpop.f32.mrf.mxu0
        %v549 = vadd.f32 0.0, %v548
        %v550 = vpop.f32.mrf.mxu0
        %551 = vdwg.mxu0
        %v553 = vsel %vm531, %v525, 0
        %v556 = vsel %vm535, %v524, 0
        %558 = vmatpush.bf16.msra.mxu0 0
        %559 = vmatpush.bf16.msra.mxu0 0
        %560 = vmatpush.bf16.msra.mxu0 0
        %561 = vmatpush.bf16.msra.mxu0 0
        %562 = vmatpush.bf16.msra.mxu0 0
        %563 = vmatpush.bf16.msra.mxu0 0
        %564 = vmatpush.bf16.msra.mxu0 0
        %565 = vmatpush.bf16.msra.mxu0 %v556
        %566 = vmatmul.bf16.gmra.mxu0 %v553
        %v567 = vpop.f32.mrf.mxu0
        %v568 = vadd.f32 %v549, %v567
        %v569 = vpop.f32.mrf.mxu0
        %570 = vdwg.mxu0
        %s571 = scalar_lea.vmem %s2, 2
        %v572 = vld [vmem:[%s571] sm:$0x1]
        %573 = vrot.lane.b32.xlu0 %v524, 124
        %v574 = vpop.permute.xlu0 %573
        %v576 = vsel %vm531, %v572, 0
        %v579 = vsel %vm535, %v574, 0
        %581 = vmatpush.bf16.msra.mxu0 0
        %582 = vmatpush.bf16.msra.mxu0 0
        %583 = vmatpush.bf16.msra.mxu0 0
        %584 = vmatpush.bf16.msra.mxu0 0
        %585 = vmatpush.bf16.msra.mxu0 0
        %586 = vmatpush.bf16.msra.mxu0 0
        %587 = vmatpush.bf16.msra.mxu0 0
        %588 = vmatpush.bf16.msra.mxu0 %v579
        %589 = vmatmul.bf16.gmra.mxu0 %v576
        %v590 = vpop.f32.mrf.mxu0
        %v591 = vadd.f32 0.0, %v590
        %v592 = vpop.f32.mrf.mxu0
        %593 = vdwg.mxu0
        %v594 = vadd.f32 %v568, %v591
        %v595 = vld [vmem:[%s6] sm:$0x3]
        %597 = vset.pattern.permute.xlu0 0
        %598 = vperm.xlu0 %597, %v595
        %v599 = vpop.permute.xlu0 %598
        %v601 = vadd.f32 %v594, %v599
        %v602 = vld [vmem:[%s10] sm:$0x3]
        %vm603 = vcmp.ge.f32.partialorder %v601, 0.0
        %605 = vset.pattern.permute.xlu0 0
        %606 = vperm.xlu0 %605, %v602
        %v607 = vpop.permute.xlu0 %606
        %v609 = vmul.f32 %v601, %v607
        %v610 = vsel %vm603, %v601, %v609
        %s611 = ssub.s32 %s514, 12
        %v612 = vstv %s611
        %v613 = vadd.s32 %v513, %v612
        %vm614 = vcmp.ge.s32.totalorder %v613, 0
        %vm615 = vcmp.lt.s32.totalorder %v613, 8
        %vm616 = vmand %vm614, %vm615
        %v617 = vsel %vm616, 1, 0
        %vm618 = vcmp.eq.s32.totalorder %v617, 1
        %v619 = vsel %vm618, %v610, 0.0
        %v620 = vpack.c.bf16 %v619, %v619
        %v621 = vld [vmem:[%s3] sm:$0x1]
        %s622 = scalar_lea.vmem %s3, 1
        %v623 = vld [vmem:[%s622] sm:$0x1]
        %625 = vrot.lane.b32.xlu0 %v620, 124
        %v626 = vpop.permute.xlu0 %625
        %vm627 = vcmask 15360
        %v629 = vsel %vm627, %v623, 0
        %vm631 = vcmask 1040384
        %v633 = vsel %vm631, %v626, 0
        %635 = vmatpush.bf16.msra.mxu0 0
        %636 = vmatpush.bf16.msra.mxu0 0
        %637 = vmatpush.bf16.msra.mxu0 0
        %638 = vmatpush.bf16.msra.mxu0 0
        %639 = vmatpush.bf16.msra.mxu0 0
        %640 = vmatpush.bf16.msra.mxu0 0
        %641 = vmatpush.bf16.msra.mxu0 0
        %642 = vmatpush.bf16.msra.mxu0 %v633
        %643 = vmatmul.bf16.gmra.mxu0 %v629
        %v644 = vpop.f32.mrf.mxu0
        %v645 = vadd.f32 0.0, %v644
        %v646 = vpop.f32.mrf.mxu0
        %647 = vdwg.mxu0
        %v649 = vsel %vm627, %v621, 0
        %v652 = vsel %vm631, %v620, 0
        %654 = vmatpush.bf16.msra.mxu0 0
        %655 = vmatpush.bf16.msra.mxu0 0
        %656 = vmatpush.bf16.msra.mxu0 0
        %657 = vmatpush.bf16.msra.mxu0 0
        %658 = vmatpush.bf16.msra.mxu0 0
        %659 = vmatpush.bf16.msra.mxu0 0
        %660 = vmatpush.bf16.msra.mxu0 0
        %661 = vmatpush.bf16.msra.mxu0 %v652
        %662 = vmatmul.bf16.gmra.mxu0 %v649
        %v663 = vpop.f32.mrf.mxu0
        %v664 = vadd.f32 %v645, %v663
        %v665 = vpop.f32.mrf.mxu0
        %666 = vdwg.mxu0
        %s667 = scalar_lea.vmem %s3, 2
        %v668 = vld [vmem:[%s667] sm:$0x1]
        %669 = vrot.lane.b32.xlu0 %v620, 120
        %v670 = vpop.permute.xlu0 %669
        %v672 = vsel %vm627, %v668, 0
        %v675 = vsel %vm631, %v670, 0
        %677 = vmatpush.bf16.msra.mxu0 0
        %678 = vmatpush.bf16.msra.mxu0 0
        %679 = vmatpush.bf16.msra.mxu0 0
        %680 = vmatpush.bf16.msra.mxu0 0
        %681 = vmatpush.bf16.msra.mxu0 0
        %682 = vmatpush.bf16.msra.mxu0 0
        %683 = vmatpush.bf16.msra.mxu0 0
        %684 = vmatpush.bf16.msra.mxu0 %v675
        %685 = vmatmul.bf16.gmra.mxu0 %v672
        %v686 = vpop.f32.mrf.mxu0
        %v687 = vadd.f32 0.0, %v686
        %v688 = vpop.f32.mrf.mxu0
        %689 = vdwg.mxu0
        %v690 = vadd.f32 %v664, %v687
        %v691 = vld [vmem:[%s7] sm:$0x3]
        %693 = vset.pattern.permute.xlu0 0
        %694 = vperm.xlu0 %693, %v691
        %v695 = vpop.permute.xlu0 %694
        %v697 = vadd.f32 %v690, %v695
        %v698 = vld [vmem:[%s11] sm:$0x3]
        %vm699 = vcmp.ge.f32.partialorder %v697, 0.0
        %701 = vset.pattern.permute.xlu0 0
        %702 = vperm.xlu0 %701, %v698
        %v703 = vpop.permute.xlu0 %702
        %v705 = vmul.f32 %v697, %v703
        %v706 = vsel %vm699, %v697, %v705
        %s707 = ssub.s32 %s514, 8
        %v708 = vstv %s707
        %v709 = vadd.s32 %v513, %v708
        %vm710 = vcmp.ge.s32.totalorder %v709, 0
        %vm711 = vcmp.lt.s32.totalorder %v709, 8
        %vm712 = vmand %vm710, %vm711
        %v713 = vsel %vm712, 1, 0
        %vm714 = vcmp.eq.s32.totalorder %v713, 1
        %v715 = vsel %vm714, %v706, 0.0
        %v716 = vpack.c.bf16 %v715, %v715
        %v717 = vld [vmem:[%s4] sm:$0xf]
        %s718 = scalar_lea.vmem %s4, 4
        %v719 = vld [vmem:[%s718] sm:$0xf]
        %721 = vrot.lane.b32.xlu0 %v716, 120
        %v722 = vpop.permute.xlu0 %721
        %v724 = vsel %vm627, %v719, 0
        %v727 = vsel %vm631, %v722, 0
        %729 = vmatpush.bf16.msra.mxu0 0
        %730 = vmatpush.bf16.msra.mxu0 0
        %731 = vmatpush.bf16.msra.mxu0 0
        %732 = vmatpush.bf16.msra.mxu0 0
        %733 = vmatpush.bf16.msra.mxu0 0
        %734 = vmatpush.bf16.msra.mxu0 0
        %735 = vmatpush.bf16.msra.mxu0 0
        %736 = vmatpush.bf16.msra.mxu0 %v727
        %737 = vmatmul.bf16.gmra.mxu0 %v724
        %v738 = vpop.f32.mrf.mxu0
        %v739 = vadd.f32 0.0, %v738
        %v740 = vpop.f32.mrf.mxu0
        %741 = vdwg.mxu0
        %v743 = vsel %vm627, %v717, 0
        %v746 = vsel %vm631, %v716, 0
        %748 = vmatpush.bf16.msra.mxu0 0
        %749 = vmatpush.bf16.msra.mxu0 0
        %750 = vmatpush.bf16.msra.mxu0 0
        %751 = vmatpush.bf16.msra.mxu0 0
        %752 = vmatpush.bf16.msra.mxu0 0
        %753 = vmatpush.bf16.msra.mxu0 0
        %754 = vmatpush.bf16.msra.mxu0 0
        %755 = vmatpush.bf16.msra.mxu0 %v746
        %756 = vmatmul.bf16.gmra.mxu0 %v743
        %v757 = vpop.f32.mrf.mxu0
        %v758 = vadd.f32 %v739, %v757
        %v759 = vpop.f32.mrf.mxu0
        %760 = vdwg.mxu0
        %s761 = scalar_lea.vmem %s4, 8
        %v762 = vld [vmem:[%s761] sm:$0xf]
        %763 = vrot.lane.b32.xlu0 %v716, 112
        %v764 = vpop.permute.xlu0 %763
        %v766 = vsel %vm627, %v762, 0
        %v769 = vsel %vm631, %v764, 0
        %771 = vmatpush.bf16.msra.mxu0 0
        %772 = vmatpush.bf16.msra.mxu0 0
        %773 = vmatpush.bf16.msra.mxu0 0
        %774 = vmatpush.bf16.msra.mxu0 0
        %775 = vmatpush.bf16.msra.mxu0 0
        %776 = vmatpush.bf16.msra.mxu0 0
        %777 = vmatpush.bf16.msra.mxu0 0
        %778 = vmatpush.bf16.msra.mxu0 %v769
        %779 = vmatmul.bf16.gmra.mxu0 %v766
        %v780 = vpop.f32.mrf.mxu0
        %v781 = vadd.f32 0.0, %v780
        %v782 = vpop.f32.mrf.mxu0
        %783 = vdwg.mxu0
        %v784 = vadd.f32 %v758, %v781
        %v785 = vld [vmem:[%s8] sm:$0xff]
        %787 = vset.pattern.permute.xlu0 0
        %788 = vperm.xlu0 %787, %v785
        %v789 = vpop.permute.xlu0 %788
        %v791 = vadd.f32 %v784, %v789
        %v792 = vld [vmem:[%s12] sm:$0xff]
        %vm793 = vcmp.ge.f32.partialorder %v791, 0.0
        %795 = vset.pattern.permute.xlu0 0
        %796 = vperm.xlu0 %795, %v792
        %v797 = vpop.permute.xlu0 %796
        %v799 = vmul.f32 %v791, %v797
        %v800 = vsel %vm793, %v791, %v799
        %802 = vrot.lane.b32.xlu0 %v523, 114
        %v803 = vpop.permute.xlu0 %802
        %v805 = vadd.f32 %v800, %v803
        %806 = vst.msk [vmem:[%s457] sm:$0xff] %vm531, %v805
        %s807 = sand.u32 %s329, 1
        %s808 = scalar_lea.sflag [#allocation3], %s807
        %s809 = sand.u32 %s329, 1
        %s810 = smul.addr %s809, 8
        %s811 = scalar_lea.vmem [#allocation2], %s810
        // Predicated region
        $region73: #{tpu_custom_call.1} parent=71 // pred_check
          %p812 = pneg %p339
        $region74: #{tpu_custom_call.1} parent=71 // pred_check_branch
          %814 = sbr.rel (%p812) target = $region76
        $region75: #{tpu_custom_call.1} parent=71 // pred_region
          %816 = vsyncadd %s808, 0
          %s817 = sadd.s32 %s32, %s31
          %s818 = smul.addr %s817, 8
          %s819 = scalar_lea.hbm %s13, %s818
          %s821 = sshll.u32 %s811, 4
          %s822 = int_to_ptr.vmem [resolvable:$true] %s821
          %s823 = sshll.u32 %s819, 4
          %s824 = int_to_ptr.hbm [resolvable:$true] %s823
          %826 = dma.vmem_to_hbm [thread:$0]  %s822, 128, %s824, %s808
        $region76: #{tpu_custom_call.1} parent=71 // pred_fallthru
          _
      $region72: #{tpu_custom_call.1} parent=5 // pred_fallthru
        _
      %p827 = scmp.le.s32.totalorder 2, %s22
      // Predicated region
      $region77: #{tpu_custom_call.1} parent=5 // pred_check
        %p828 = pneg %p827
      $region78: #{tpu_custom_call.1} parent=5 // pred_check_branch
        %830 = sbr.rel (%p828) target = $region80
      $region79: #{tpu_custom_call.1} parent=5 // pred_region
        %s831 = ssub.s32 %s22, 2
        // Predicated region
        $region81: #{tpu_custom_call.1} parent=79 // pred_check
          %p832 = pneg %p345
        $region82: #{tpu_custom_call.1} parent=79 // pred_check_branch
          %834 = sbr.rel (%p832) target = $region84
        $region83: #{tpu_custom_call.1} parent=79 // pred_region
          %s835 = sand.u32 %s330, 1
          %s836 = scalar_lea.sflag [#allocation3], %s835
          %s837 = sand.u32 %s330, 1
          %s838 = smul.addr %s837, 8
          %s839 = scalar_lea.vmem [#allocation2], %s838
          %841 = dma.done %s836, 128
        $region84: #{tpu_custom_call.1} parent=79 // pred_fallthru
          _
      $region80: #{tpu_custom_call.1} parent=5 // pred_fallthru
        _
    $region6: #{tpu_custom_call.1} parent=1 // loop_footer
      %s26 = sadd.s32 1, %s22
    $region7: #{tpu_custom_call.1} parent=1 // loop_footer_branch
      %21 = sbr.rel target = $region3
    $region8: #{tpu_custom_call.1} parent=1 // loop_exit
      _
    %842 = vsyncpa [#allocation3], 1
    %s843 = scalar_lea.sflag [#allocation3], 1
    %844 = vsyncpa %s843, 1

</llo_original>
